<compile_context>
chip_gen: v6e
topology: v6e:2x2x1
jax: 0.10.0
libtpu: 0.0.40
codegen_flags: <defaults>
</compile_context>

<pallas_src>
import math

import jax
import jax.numpy as jnp
from jax import lax
from jax.experimental import pallas as pl
from jax.experimental.pallas import tpu as pltpu


def _round_up(a, b):
    return ((a + b - 1) // b) * b


def rank1_linear_kernel(x_ref, w_ref, r_ref, b_ref, o_ref):
    # x_ref : (tm, tk) bf16 (already scaled by s)    w_ref : (tk, tn) bf16 (pre-transposed)
    # r_ref : (1, tn)  f32                           b_ref : (1, tn)  f32
    # o_ref : (tm, tn) f32 -- resident across the k axis, used directly as the accumulator.
    k = pl.program_id(2)

    prod = lax.dot_general(
        x_ref[...], w_ref[...],
        dimension_numbers=(((1,), (0,)), ((), ())),   # canonical [M,K] x [K,N]
        preferred_element_type=jnp.float32)

    @pl.when(k == 0)
    def _():
        o_ref[...] = prod

    @pl.when(k > 0)
    def _():
        o_ref[...] += prod

    # Epilogue: output-side rank-1 scale + bias, in place, on the last K step only.
    @pl.when(k == pl.num_programs(2) - 1)
    def _():
        o_ref[...] = o_ref[...] * r_ref[...] + b_ref[...]


def prepare_rank1_weight(weight):
    """Pad the (Dout, Din) PyTorch weight to 128-multiples, transpose to (Kp, Np) and cast to
    bf16. Call ONCE per parameter update and reuse the result across forward calls."""
    dout, din = weight.shape
    Kp = _round_up(din, 128)
    Np = _round_up(dout, 128)
    return (jnp.zeros((Kp, Np), jnp.bfloat16)
            .at[:din, :dout].set(weight.T.astype(jnp.bfloat16)))


def rank1_linear(x, w_prepared, s, r, bias, din, dout):
    """x: (B, din) f32, w_prepared: (Kp, Np) bf16 from prepare_rank1_weight,
    s: (din,), r: (dout,), bias: (dout,)."""
    B, Din = x.shape
    assert Din == din
    Kp, Np = w_prepared.shape
    assert Kp == _round_up(din, 128) and Np == _round_up(dout, 128)

    # ---- Tile selection: lane-dense 128-multiples, as large as the shape allows. ----
    tk = next(t for t in (1024, 512, 256, 128) if Kp % t == 0)
    tn = next(t for t in (512, 256, 128) if Np % t == 0)
    if B >= 256 and B % 256 == 0:
        tm = 256
    elif B >= 128:
        tm = 128
    else:
        tm = _round_up(max(B, 8), 8)      # single M tile for tiny batches
    Mp = _round_up(B, tm)

    # v7x has 2 TensorCores: make sure the parallel (M, N) grid has >= 2 cells when the
    # shape allows (harmless on single-TC v5e/v6e).
    while (Mp // tm) * (Np // tn) < 2 and tn > 128:
        tn //= 2

    grid = (Mp // tm, Np // tn, Kp // tk)
    grid_m, grid_n, grid_k = grid

    # ---- Wrapper-side prep: fold the input-side rank-1 scale into the pad/cast pass. ----
    xs = x.astype(jnp.float32) * s.astype(jnp.float32)[None, :]
    x_p = jnp.zeros((Mp, Kp), jnp.bfloat16).at[:B, :Din].set(xs.astype(jnp.bfloat16))
    r_p = jnp.zeros((1, Np), jnp.float32).at[0, :dout].set(r.astype(jnp.float32))
    b_p = jnp.zeros((1, Np), jnp.float32).at[0, :dout].set(bias.astype(jnp.float32))

    # VMEM budget (double-buffered bf16 x/W tiles + double-buffered f32 out tile + vectors),
    # capped at 32 MiB so the config also fits v7x's smaller per-TC VMEM.
    tile_bytes = (2 * (tm * tk + tk * tn) * 2     # bf16 x / W tiles, 2-deep
                  + 2 * tm * tn * 4               # f32 output tile, 2-deep
                  + 2 * 2 * tn * 4)               # r / bias vectors
    vmem_limit = int(min(32 * 1024 * 1024, max(2 * tile_bytes, 16 * 1024 * 1024)))

    cost = pl.CostEstimate(
        flops=2 * Mp * Np * Kp,
        transcendentals=0,
        bytes_accessed=(grid_n * Mp * Kp * 2      # x re-read per N tile
                        + grid_m * Kp * Np * 2    # W re-read per M tile
                        + Mp * Np * 4 + 2 * Np * 4))

    out_p = pl.pallas_call(
        rank1_linear_kernel,
        out_shape=jax.ShapeDtypeStruct((Mp, Np), jnp.float32),
        grid_spec=pltpu.PrefetchScalarGridSpec(
            num_scalar_prefetch=0,
            grid=grid,
            in_specs=[
                pl.BlockSpec((tm, tk), lambda i, j, k: (i, k)),   # x (pre-scaled by s)
                pl.BlockSpec((tk, tn), lambda i, j, k: (k, j)),   # W (pre-transposed (K, N))
                pl.BlockSpec((1, tn), lambda i, j, k: (0, j)),    # r (output-side factor)
                pl.BlockSpec((1, tn), lambda i, j, k: (0, j)),    # bias
            ],
            out_specs=pl.BlockSpec((tm, tn), lambda i, j, k: (i, j)),
        ),
        compiler_params=pltpu.CompilerParams(
            dimension_semantics=("parallel", "parallel", "arbitrary"),
            vmem_limit_bytes=vmem_limit),
        cost_estimate=cost,
    )(x_p, w_prepared, r_p, b_p)

    return out_p[:B, :dout]


def make_params(key, in_features, out_features, components=1):
    """Deterministic synthetic init mirroring Rank1Linear.reset_parameters()."""
    kw, kb, ks_mu, kr_mu = jax.random.split(key, 4)
    fan_in = in_features
    bound = 1.0 / math.sqrt(fan_in)

    # nn.Linear default (kaiming_uniform a=sqrt(5)) -> U(-1/sqrt(fan_in), 1/sqrt(fan_in))
    weight = jax.random.uniform(kw, (out_features, in_features),
                                minval=-bound, maxval=bound, dtype=jnp.float32)
    bias = jax.random.uniform(kb, (components, out_features),
                              minval=-bound, maxval=bound, dtype=jnp.float32)

    # GaussianParameter.sign_init(): mean = random +/-1, small std via rho (softplus(rho)=0.1).
    s_mu = jnp.sign(jax.random.normal(ks_mu, (components, in_features))).astype(jnp.float32)
    r_mu = jnp.sign(jax.random.normal(kr_mu, (components, out_features))).astype(jnp.float32)
    rho_init = jnp.log(jnp.expm1(jnp.float32(0.1)))
    s_rho = jnp.full((components, in_features), rho_init, dtype=jnp.float32)
    r_rho = jnp.full((components, out_features), rho_init, dtype=jnp.float32)
    return weight, bias, s_mu, s_rho, r_mu, r_rho


def sample_gaussian(mu, rho, key):
    # reparameterized sample: mu + softplus(rho) * eps
    eps = jax.random.normal(key, mu.shape, dtype=mu.dtype)
    return mu + jax.nn.softplus(rho) * eps


def rank1_linear_forward(x, params, w_prepared, component, sample_key):
    # TODO(synk): the stateful component_counter cycling lives in the caller; the mixture
    # component index is passed explicitly here.
    weight, bias, s_mu, s_rho, r_mu, r_rho = params
    dout, din = weight.shape
    ks, kr = jax.random.split(sample_key)
    s = sample_gaussian(s_mu[component], s_rho[component], ks)
    r = sample_gaussian(r_mu[component], r_rho[component], kr)
    out = rank1_linear(x, w_prepared, s, r, bias[component], din, dout)
    return out, s, r


def _run_case(key, batch, din, dout, components=1):
    k_x, k_param, k_sample = jax.random.split(key, 3)
    x = jax.random.normal(k_x, (batch, din), dtype=jnp.float32)
    params = make_params(k_param, din, dout, components)
    weight, bias = params[0], params[1]

    # Weight prep happens once per parameter update, not per forward.
    w_prepared = prepare_rank1_weight(weight)

    out, s, r = rank1_linear_forward(x, params, w_prepared, component=0, sample_key=k_sample)
    out = jax.block_until_ready(out)

    # Full-precision f32 reference (loose tolerance: kernel streams bf16 operands).
    ref_f32 = ((x * s[None, :]) @ weight.T) * r[None, :] + bias[0][None, :]
    # bf16-operand reference matching the kernel: (x*s) rounded to bf16 once, bf16 W, f32 acc.
    xs_bf = (x * s[None, :]).astype(jnp.bfloat16).astype(jnp.float32)
    w_bf = weight.astype(jnp.bfloat16).astype(jnp.float32)
    ref_bf = (xs_bf @ w_bf.T) * r[None, :] + bias[0][None, :]

    assert out.shape == (batch, dout)
    assert jnp.allclose(out, ref_bf, atol=5e-4, rtol=5e-4), "mismatch vs bf16-emulated reference"
    assert jnp.allclose(out, ref_f32, atol=5e-2, rtol=5e-2), "mismatch vs f32 reference"


if __name__ == "__main__":
    key = jax.random.PRNGKey(0)
    k1, k2, k3 = jax.random.split(key, 3)

    # Small demo shape (single-tile grid after padding to 128 lanes).
    _run_case(k1, batch=8, din=32, dout=32, components=1)
    # Shape exercising K accumulation (grid_k=5), multiple N tiles and padding/slicing.
    _run_case(k2, batch=16, din=640, dout=384, components=1)
    # Shape exercising the enlarged tiles (tm=256, tk=512) and the v7x >=2-parallel-cell split.
    _run_case(k3, batch=256, din=512, dout=512, components=1)

    print("KERNEL_OK")
</pallas_src>

<mosaic_0001>
module attributes {stable_mosaic.version = 11 : i64} {
  func.func @rank1_linear_kernel(%arg0: i32, %arg1: i32, %arg2: i32, %arg3: memref<8x128xbf16, #tpu.memory_space<vmem>>, %arg4: memref<128x128xbf16, #tpu.memory_space<vmem>>, %arg5: memref<1x128xf32, #tpu.memory_space<vmem>>, %arg6: memref<1x128xf32, #tpu.memory_space<vmem>>, %arg7: memref<8x128xf32, #tpu.memory_space<vmem>>) attributes {dimension_semantics = [#tpu.dimension_semantics<parallel>, #tpu.dimension_semantics<parallel>, #tpu.dimension_semantics<arbitrary>], iteration_bounds = array<i64: 1, 1, 1>, scalar_prefetch = 0 : i64, scratch_operands = 0 : i64, tpu.core_type = #tpu.core_type<tc>, window_params = [{transform_indices = @transform_0, window_bounds = array<i64: 8, 128>}, {transform_indices = @transform_1, window_bounds = array<i64: 128, 128>}, {transform_indices = @transform_2, window_bounds = array<i64: 1, 128>}, {transform_indices = @transform_3, window_bounds = array<i64: 1, 128>}, {transform_indices = @transform_4, window_bounds = array<i64: 8, 128>}]} {
    %c0 = arith.constant 0 : index
    %c0_0 = arith.constant 0 : index
    %0 = vector.load %arg3[%c0, %c0_0] : memref<8x128xbf16, #tpu.memory_space<vmem>>, vector<8x128xbf16>
    %c0_1 = arith.constant 0 : index
    %c0_2 = arith.constant 0 : index
    %1 = vector.load %arg4[%c0_1, %c0_2] : memref<128x128xbf16, #tpu.memory_space<vmem>>, vector<128x128xbf16>
    %cst = arith.constant dense<0.000000e+00> : vector<8x128xf32>
    %2 = tpu.matmul %0, %1, %cst {dimension_numbers = #tpu.dot_dimension_numbers<[1], [0], [0], [1], [0, 0, 1, 1], [], []>} : vector<8x128xbf16>, vector<128x128xbf16>, vector<8x128xf32> -> vector<8x128xf32>
    %c0_i32 = arith.constant 0 : i32
    %3 = arith.cmpi eq, %arg2, %c0_i32 : i32
    %4 = arith.extui %3 : i1 to i32
    %c0_i32_3 = arith.constant 0 : i32
    %5 = arith.cmpi ne, %4, %c0_i32_3 : i32
    scf.if %5 {
      %c0_8 = arith.constant 0 : index
      %c0_9 = arith.constant 0 : index
      %12 = vector.load %arg7[%c0_8, %c0_9] : memref<8x128xf32, #tpu.memory_space<vmem>>, vector<8x128xf32>
      tpu.vector_store %arg7[%c0_8, %c0_9], %2 {strides = array<i32>} : memref<8x128xf32, #tpu.memory_space<vmem>>, vector<8x128xf32>,
    } else {
    }
    %c0_i32_4 = arith.constant 0 : i32
    %6 = arith.cmpi sgt, %arg2, %c0_i32_4 : i32
    %7 = arith.extui %6 : i1 to i32
    %c0_i32_5 = arith.constant 0 : i32
    %8 = arith.cmpi ne, %7, %c0_i32_5 : i32
    scf.if %8 {
      %c0_8 = arith.constant 0 : index
      %c0_9 = arith.constant 0 : index
      %12 = vector.load %arg7[%c0_8, %c0_9] : memref<8x128xf32, #tpu.memory_space<vmem>>, vector<8x128xf32>
      %13 = arith.addf %12, %2 : vector<8x128xf32>
      %c0_10 = arith.constant 0 : index
      %c0_11 = arith.constant 0 : index
      %14 = vector.load %arg7[%c0_10, %c0_11] : memref<8x128xf32, #tpu.memory_space<vmem>>, vector<8x128xf32>
      tpu.vector_store %arg7[%c0_10, %c0_11], %13 {strides = array<i32>} : memref<8x128xf32, #tpu.memory_space<vmem>>, vector<8x128xf32>,
    } else {
    }
    %c0_i32_6 = arith.constant 0 : i32
    %9 = arith.cmpi eq, %arg2, %c0_i32_6 : i32
    %10 = arith.extui %9 : i1 to i32
    %c0_i32_7 = arith.constant 0 : i32
    %11 = arith.cmpi ne, %10, %c0_i32_7 : i32
    scf.if %11 {
      %c0_8 = arith.constant 0 : index
      %c0_9 = arith.constant 0 : index
      %12 = vector.load %arg7[%c0_8, %c0_9] : memref<8x128xf32, #tpu.memory_space<vmem>>, vector<8x128xf32>
      %c0_10 = arith.constant 0 : index
      %c0_11 = arith.constant 0 : index
      %13 = vector.load %arg5[%c0_10, %c0_11] : memref<1x128xf32, #tpu.memory_space<vmem>>, vector<1x128xf32>
      %14 = vector.broadcast %13 : vector<1x128xf32> to vector<8x128xf32>
      %15 = arith.mulf %12, %14 : vector<8x128xf32>
      %c0_12 = arith.constant 0 : index
      %c0_13 = arith.constant 0 : index
      %16 = vector.load %arg6[%c0_12, %c0_13] : memref<1x128xf32, #tpu.memory_space<vmem>>, vector<1x128xf32>
      %17 = vector.broadcast %16 : vector<1x128xf32> to vector<8x128xf32>
      %18 = arith.addf %15, %17 : vector<8x128xf32>
      %c0_14 = arith.constant 0 : index
      %c0_15 = arith.constant 0 : index
      %19 = vector.load %arg7[%c0_14, %c0_15] : memref<8x128xf32, #tpu.memory_space<vmem>>, vector<8x128xf32>
      tpu.vector_store %arg7[%c0_14, %c0_15], %18 {strides = array<i32>} : memref<8x128xf32, #tpu.memory_space<vmem>>, vector<8x128xf32>,
    } else {
    }
    return
  }
  func.func @transform_0(%arg0: i32, %arg1: i32, %arg2: i32) -> (i32, i32) {
    %c0_i32 = arith.constant 0 : i32
    return %arg0, %arg2 : i32, i32
  }
  func.func @transform_1(%arg0: i32, %arg1: i32, %arg2: i32) -> (i32, i32) {
    %c0_i32 = arith.constant 0 : i32
    return %arg2, %arg1 : i32, i32
  }
  func.func @transform_2(%arg0: i32, %arg1: i32, %arg2: i32) -> (i32, i32) {
    %c0_i32 = arith.constant 0 : i32
    %c0_i32_0 = arith.constant 0 : i32
    return %c0_i32, %arg1 : i32, i32
  }
  func.func @transform_3(%arg0: i32, %arg1: i32, %arg2: i32) -> (i32, i32) {
    %c0_i32 = arith.constant 0 : i32
    %c0_i32_0 = arith.constant 0 : i32
    return %c0_i32, %arg1 : i32, i32
  }
  func.func @transform_4(%arg0: i32, %arg1: i32, %arg2: i32) -> (i32, i32) {
    %c0_i32 = arith.constant 0 : i32
    return %arg0, %arg1 : i32, i32
  }
}

</mosaic_0001>

<llo_original>
// kernel: tpu_custom_call.1
$region0: #{tpu_custom_call.1}
  #allocation0 [shape = 'u32[]', space=smem, size = 0x4, offset = 0x4, fixed_abs, tag = 'smem constant byte address 0x4 - core index']
  #allocation1 [shape = 'u32[144,128]{1,0:T(1,128)}', space=vmem, size = 0x12000, scoped, tag = 'internal scratch']
  %s0 = inlined_call_operand.hbm [shape: bf16[8,128], index: 0, kind: input, shape index: {}]
  %s1 = inlined_call_operand.hbm [shape: bf16[128,128], index: 1, kind: input, shape index: {}]
  %s2 = inlined_call_operand.vmem [shape: f32[1,128], index: 2, kind: input, shape index: {}]
  %s3 = inlined_call_operand.vmem [shape: f32[1,128], index: 3, kind: input, shape index: {}]
  %s4 = inlined_call_operand.hbm [shape: f32[8,128], index: 4, kind: output, shape index: {}]
  %s5 = sld [smem:[#allocation0]]
  $region46: #{tpu_custom_call.1} parent=0
    _
  %s7 = ssub.s32 1, %s5
  %s8 = scalar_select 0, %s7, %s5
  $region1: #{tpu_custom_call.1} parent=0
    #allocation2 [shape = 'u8[2048]{0}', space=vmem, size = 0x800, scoped, tag = 'input window, operand 0, single buffered']
    #allocation3 [shape = 's32[1]{0}', space=sflag, size = 0x4, scoped, tag = 'scoped memory for tpu_custom_call.1']
    #allocation4 [shape = 's32[1]{0}', space=sflag, size = 0x4, scoped, tag = 'scoped memory for tpu_custom_call.1']
    #allocation5 [shape = 'u8[32768]{0}', space=vmem, size = 0x8000, scoped, tag = 'input window, operand 1, single buffered']
    #allocation6 [shape = 's32[1]{0}', space=sflag, size = 0x4, scoped, tag = 'scoped memory for tpu_custom_call.1']
    #allocation7 [shape = 'u8[4096]{0}', space=vmem, size = 0x1000, scoped, tag = 'output window, operand 0, single buffered']
    %9 = vsyncpa [#allocation3], 0
    %10 = vsyncpa [#allocation6], 0
    %11 = vsyncpa [#allocation4], 0
    // Predicated region
    $region2: #{tpu_custom_call.1} parent=1 // pred_check
      _
    $region3: #{tpu_custom_call.1} parent=1 // pred_check_branch
      %13 = sbr.rel (0) target = $region5
    $region4: #{tpu_custom_call.1} parent=1 // pred_region
      %s15 = ssub.s32 64, 64
      %16 = vsyncadd [#allocation3], %s15
      %s18 = sshll.u32 [#allocation2], 4
      %s19 = int_to_ptr.vmem [resolvable:$true] %s18
      %21 = dma.hbm_to_vmem [thread:$0]  %s0, 64, %s19, [#allocation3]
    $region5: #{tpu_custom_call.1} parent=1 // pred_fallthru
      _
    // Predicated region
    $region6: #{tpu_custom_call.1} parent=1 // pred_check
      _
    $region7: #{tpu_custom_call.1} parent=1 // pred_check_branch
      %23 = sbr.rel (0) target = $region9
    $region8: #{tpu_custom_call.1} parent=1 // pred_region
      %s25 = ssub.s32 1024, 1024
      %26 = vsyncadd [#allocation6], %s25
      %s27 = sshll.u32 [#allocation5], 4
      %s28 = int_to_ptr.vmem [resolvable:$true] %s27
      %33 = dma.hbm_to_vmem [thread:$0]  %s1, 1024, %s28, [#allocation6], 64, 64, 4
    $region9: #{tpu_custom_call.1} parent=1 // pred_fallthru
      _
    // Predicated region
    $region10: #{tpu_custom_call.1} parent=1 // pred_check
      _
    $region11: #{tpu_custom_call.1} parent=1 // pred_check_branch
      %35 = sbr.rel (0) target = $region13
    $region12: #{tpu_custom_call.1} parent=1 // pred_region
      _
    $region13: #{tpu_custom_call.1} parent=1 // pred_fallthru
      _
    // Predicated region
    $region14: #{tpu_custom_call.1} parent=1 // pred_check
      _
    $region15: #{tpu_custom_call.1} parent=1 // pred_check_branch
      %37 = sbr.rel (0) target = $region17
    $region16: #{tpu_custom_call.1} parent=1 // pred_region
      _
    $region17: #{tpu_custom_call.1} parent=1 // pred_fallthru
      _
    // Predicated region
    $region18: #{tpu_custom_call.1} parent=1 // pred_check
      _
    $region19: #{tpu_custom_call.1} parent=1 // pred_check_branch
      %39 = sbr.rel (0) target = $region21
    $region20: #{tpu_custom_call.1} parent=1 // pred_region
      %40 = dma.done [#allocation3], 64
    $region21: #{tpu_custom_call.1} parent=1 // pred_fallthru
      _
    // Predicated region
    $region22: #{tpu_custom_call.1} parent=1 // pred_check
      _
    $region23: #{tpu_custom_call.1} parent=1 // pred_check_branch
      %42 = sbr.rel (0) target = $region25
    $region24: #{tpu_custom_call.1} parent=1 // pred_region
      %43 = dma.done [#allocation6], 1024
    $region25: #{tpu_custom_call.1} parent=1 // pred_fallthru
      _
    %v45 = vld [vmem:[#allocation2] sm:$0xf]
    %v46 = vld [vmem:[#allocation5] sm:$0xf]
    %v47 = vld [vmem:[#allocation5 + $0x4] sm:$0xf]
    %v48 = vld [vmem:[#allocation5 + $0x8] sm:$0xf]
    %v49 = vld [vmem:[#allocation5 + $0xc] sm:$0xf]
    %v50 = vld [vmem:[#allocation5 + $0x10] sm:$0xf]
    %v51 = vld [vmem:[#allocation5 + $0x14] sm:$0xf]
    %v52 = vld [vmem:[#allocation5 + $0x18] sm:$0xf]
    %v53 = vld [vmem:[#allocation5 + $0x1c] sm:$0xf]
    %v54 = vld [vmem:[#allocation5 + $0x20] sm:$0xf]
    %v55 = vld [vmem:[#allocation5 + $0x24] sm:$0xf]
    %v56 = vld [vmem:[#allocation5 + $0x28] sm:$0xf]
    %v57 = vld [vmem:[#allocation5 + $0x2c] sm:$0xf]
    %v58 = vld [vmem:[#allocation5 + $0x30] sm:$0xf]
    %v59 = vld [vmem:[#allocation5 + $0x34] sm:$0xf]
    %v60 = vld [vmem:[#allocation5 + $0x38] sm:$0xf]
    %v61 = vld [vmem:[#allocation5 + $0x3c] sm:$0xf]
    %v78 = vunpack.c.l.b16 %v46
    %v79 = vunpack.c.l.b16 %v47
    %v80 = vunpack.c.l.b16 %v48
    %v81 = vunpack.c.l.b16 %v49
    %v82 = vunpack.c.l.b16 %v50
    %v83 = vunpack.c.l.b16 %v51
    %v84 = vunpack.c.l.b16 %v52
    %v85 = vunpack.c.l.b16 %v53
    %v86 = vunpack.c.l.b16 %v54
    %v87 = vunpack.c.l.b16 %v55
    %v88 = vunpack.c.l.b16 %v56
    %v89 = vunpack.c.l.b16 %v57
    %v90 = vunpack.c.l.b16 %v58
    %v91 = vunpack.c.l.b16 %v59
    %v92 = vunpack.c.l.b16 %v60
    %v93 = vunpack.c.l.b16 %v61
    %v94 = vpack.c.b16 %v79, %v78
    %v95 = vpack.c.b16 %v81, %v80
    %v96 = vpack.c.b16 %v83, %v82
    %v97 = vpack.c.b16 %v85, %v84
    %v98 = vpack.c.b16 %v87, %v86
    %v99 = vpack.c.b16 %v89, %v88
    %v100 = vpack.c.b16 %v91, %v90
    %v101 = vpack.c.b16 %v93, %v92
    %110 = vmatprep.subr.bf16.mxu0 0
    %111 = vmatpush1.bf16.msra.mxu0 %v101
    %112 = vmatprep.subr.bf16.mxu0 0
    %113 = vmatpush1.bf16.msra.mxu0 %v100
    %114 = vmatprep.subr.bf16.mxu0 0
    %115 = vmatpush1.bf16.msra.mxu0 %v99
    %116 = vmatprep.subr.bf16.mxu0 0
    %117 = vmatpush1.bf16.msra.mxu0 %v98
    %118 = vmatprep.subr.bf16.mxu0 0
    %119 = vmatpush1.bf16.msra.mxu0 %v97
    %120 = vmatprep.subr.bf16.mxu0 0
    %121 = vmatpush1.bf16.msra.mxu0 %v96
    %122 = vmatprep.subr.bf16.mxu0 0
    %123 = vmatpush1.bf16.msra.mxu0 %v95
    %124 = vmatprep.subr.bf16.mxu0 0
    %125 = vmatpush1.bf16.msra.mxu0 %v94
    %126 = vmatprep.subr.bf16.mxu0 0
    %127 = vmatpush2.bf16.msra.mxu0 0
    %128 = vmatprep.subr.bf16.mxu0 0
    %129 = vmatpush2.bf16.msra.mxu0 0
    %130 = vmatprep.subr.bf16.mxu0 0
    %131 = vmatpush2.bf16.msra.mxu0 0
    %132 = vmatprep.subr.bf16.mxu0 0
    %133 = vmatpush2.bf16.msra.mxu0 0
    %134 = vmatprep.subr.bf16.mxu0 0
    %135 = vmatpush2.bf16.msra.mxu0 0
    %136 = vmatprep.subr.bf16.mxu0 0
    %137 = vmatpush2.bf16.msra.mxu0 0
    %138 = vmatprep.subr.bf16.mxu0 0
    %139 = vmatpush2.bf16.msra.mxu0 0
    %140 = vmatprep.subr.bf16.mxu0 0
    %141 = vmatpush2.bf16.msra.mxu0 0
    %142 = vmatprep.mubr.bf16.mxu0 0
    %143 = vmatmul.mubr.bf16.gmra.mxu0 %v45
    %v144 = vpop.f32.mrf.mxu0
    %v145 = vadd.f32 0.0, %v144
    %v146 = vpop.f32.mrf.mxu0
    %v147 = vpop.f32.mrf.mxu0
    %v148 = vpop.f32.mrf.mxu0
    %149 = vdwg.mxu0
    %p150 = scmp.eq.s32.totalorder 0, 0
    // Predicated region
    $region26: #{tpu_custom_call.1} parent=1 // pred_check
      %p151 = pneg %p150
    $region27: #{tpu_custom_call.1} parent=1 // pred_check_branch
      %153 = sbr.rel (%p151) target = $region29
    $region28: #{tpu_custom_call.1} parent=1 // pred_region
      %154 = vst [vmem:[#allocation7] sm:$0xff] %v145
    $region29: #{tpu_custom_call.1} parent=1 // pred_fallthru
      _
    %p155 = scmp.gt.s32.totalorder 0, 0
    // Predicated region
    $region30: #{tpu_custom_call.1} parent=1 // pred_check
      %p156 = pneg %p155
    $region31: #{tpu_custom_call.1} parent=1 // pred_check_branch
      %158 = sbr.rel (%p156) target = $region33
    $region32: #{tpu_custom_call.1} parent=1 // pred_region
      %v159 = vld [vmem:[#allocation7] sm:$0xff]
      %v160 = vadd.f32 %v159, %v145
      %161 = vst [vmem:[#allocation7] sm:$0xff] %v160
    $region33: #{tpu_custom_call.1} parent=1 // pred_fallthru
      _
    // Predicated region
    $region34: #{tpu_custom_call.1} parent=1 // pred_check
      %p162 = pneg %p150
    $region35: #{tpu_custom_call.1} parent=1 // pred_check_branch
      %164 = sbr.rel (%p162) target = $region37
    $region36: #{tpu_custom_call.1} parent=1 // pred_region
      %v165 = vld [vmem:[#allocation7] sm:$0xff]
      %v166 = vld [vmem:[%s2] sm:$0x1]
      %v168 = vlaneseq
      %v169 = vshrl.u32 %v168, 7
      %v170 = vsub.s32 0, %v169
      %v171 = vrot.slane %v166, %v170
      %v173 = vmul.f32 %v165, %v171
      %v174 = vld [vmem:[%s3] sm:$0x1]
      %v176 = vlaneseq
      %v177 = vshrl.u32 %v176, 7
      %v178 = vsub.s32 0, %v177
      %v179 = vrot.slane %v174, %v178
      %v181 = vadd.f32 %v173, %v179
      %182 = vst [vmem:[#allocation7] sm:$0xff] %v181
    $region37: #{tpu_custom_call.1} parent=1 // pred_fallthru
      _
    // Predicated region
    $region38: #{tpu_custom_call.1} parent=1 // pred_check
      _
    $region39: #{tpu_custom_call.1} parent=1 // pred_check_branch
      %184 = sbr.rel (0) target = $region41
    $region40: #{tpu_custom_call.1} parent=1 // pred_region
      %s186 = ssub.s32 128, 128
      %187 = vsyncadd [#allocation4], %s186
      %s189 = sshll.u32 [#allocation7], 4
      %s190 = int_to_ptr.vmem [resolvable:$true] %s189
      %192 = dma.vmem_to_hbm [thread:$0]  %s190, 128, %s4, [#allocation4]
    $region41: #{tpu_custom_call.1} parent=1 // pred_fallthru
      _
    // Predicated region
    $region42: #{tpu_custom_call.1} parent=1 // pred_check
      _
    $region43: #{tpu_custom_call.1} parent=1 // pred_check_branch
      %194 = sbr.rel (0) target = $region45
    $region44: #{tpu_custom_call.1} parent=1 // pred_region
      %195 = dma.done [#allocation4], 128
    $region45: #{tpu_custom_call.1} parent=1 // pred_fallthru
      _
    %196 = vsyncpa [#allocation3], 1
    %197 = vsyncpa [#allocation6], 1
    %198 = vsyncpa [#allocation4], 1

</llo_original>
